<compile_context>
chip_gen: v7x
topology: tpu7x:2x2x1
jax: 0.10.0
libtpu: 0.0.40
codegen_flags: <defaults>
</compile_context>

<pallas_src>
import jax
import jax.numpy as jnp
from jax.experimental import pallas as pl
from jax.experimental.pallas import tpu as pltpu


LANE = 128


# ----------------------------- fused kernel -----------------------------
def _fused_gcn_link_kernel(adj_ref, x_ref, w1_ref, w2_ref, sel_ref,
                           lw1s_ref, lw1d_ref, lw2_ref, bias_ref, out_ref):
    f32 = jnp.float32
    bf16 = jnp.bfloat16

    h_p = w1_ref.shape[1]
    c_p = w2_ref.shape[1]
    o_p = lw2_ref.shape[1]
    e_p = out_ref.shape[0]

    # Packed bias rows (static slices; widths are multiples of 128).
    b1 = bias_ref[0:1, :h_p]
    b2 = bias_ref[1:2, :c_p]
    lb1 = bias_ref[2:3, :h_p]
    lb2 = bias_ref[3:4, :o_p]

    adj = adj_ref[...]                                                   # [Np, Np] bf16 (normalized Â, zero-padded)

    # ---- conv1: h = ReLU( Â (X W1) + b1 )  (Dropout after ReLU is identity in eval) ----
    xw = jnp.dot(x_ref[...], w1_ref[...], preferred_element_type=f32)    # [Np, Hp] f32 acc
    h = jnp.dot(adj, xw.astype(bf16), preferred_element_type=f32)        # [Np, Hp]
    h = jnp.maximum(h + b1, 0.0)                                         # bias + ReLU on VPU (f32)

    # ---- conv2: z = Â (h W2) + b2 ----
    hw = jnp.dot(h.astype(bf16), w2_ref[...], preferred_element_type=f32)    # [Np, Cp]
    z = jnp.dot(adj, hw.astype(bf16), preferred_element_type=f32) + b2       # [Np, Cp]

    # ---- decode: one stacked one-hot gather (src rows then dst rows), then split ----
    # Padded node columns of Â and of the selector are zero, so padded rows never leak into
    # real outputs; keep padding zero-valued if this layout is ever changed.
    zp = jnp.dot(sel_ref[...], z.astype(bf16), preferred_element_type=f32)   # [2*Ep, Cp]
    z_src = zp[:e_p].astype(bf16)                                            # [Ep, Cp]
    z_dst = zp[e_p:].astype(bf16)                                            # [Ep, Cp]

    # cat([z_src, z_dst], 1) @ W == z_src @ W[:C] + z_dst @ W[C:]  (no lane-axis concat)
    g = (jnp.dot(z_src, lw1s_ref[...], preferred_element_type=f32)
         + jnp.dot(z_dst, lw1d_ref[...], preferred_element_type=f32)
         + lb1)
    g = jnp.maximum(g, 0.0)                                              # ReLU; Dropout is identity (eval)

    logits = jnp.dot(g.astype(bf16), lw2_ref[...], preferred_element_type=f32) + lb2
    # sigmoid via exp (EUP) + approximate reciprocal (EUP) — keeps the divide off the VPU.
    out_ref[...] = pl.reciprocal(1.0 + jnp.exp(-logits), approx=True)    # lane-dense [Ep, 128] store


# ----------------------------- glue (plain JAX) -----------------------------
def _round_up(v, m):
    return ((v + m - 1) // m) * m


def _pad2d(a, rows, cols, dtype):
    out = jnp.zeros((rows, cols), dtype)
    return out.at[:a.shape[0], :a.shape[1]].set(a.astype(dtype))


def build_gcn_adjacency(edge_index, n):
    """Dense normalized adjacency: Â = D^{-1/2}(A + I)D^{-1/2}, A[i, j] = #edges j->i."""
    src, dst = edge_index[0], edge_index[1]
    a = jnp.zeros((n, n), jnp.float32).at[dst, src].add(1.0)             # parallel edges counted (matches PyG)
    a = a + jnp.eye(n, dtype=jnp.float32)                                # add self loops
    deg = jnp.sum(a, axis=1)                                             # in-degree incl. self loop
    dinv = jnp.where(deg > 0, jax.lax.rsqrt(deg), 0.0)
    return a * dinv[:, None] * dinv[None, :]


def make_gcn_link_predictor(params, edge_index, n):
    """One-time prep: builds Â and all padded weight tensors (graph/param-invariant),
    returns a jitted per-call forward(x, pred_edge_index)."""
    f_in, hidden = params["w1"].shape
    out_c = params["w2"].shape[1]

    # Lane-dense padded sizes (last dims -> multiples of 128; N -> 128 so Â / selectors are lane-dense).
    n_p = _round_up(max(n, LANE), LANE)
    f_p = _round_up(f_in, LANE)
    h_p = _round_up(hidden, LANE)
    c_p = _round_up(out_c, LANE)

    bf16, f32 = jnp.bfloat16, jnp.float32

    # -------- invariant tensors, computed ONCE (hoisted out of the per-call path) --------
    adj_p = _pad2d(build_gcn_adjacency(edge_index, n), n_p, n_p, bf16)
    w1_p = _pad2d(params["w1"], f_p, h_p, bf16)
    w2_p = _pad2d(params["w2"], h_p, c_p, bf16)
    # link predictor: split the cat-weight of Linear(2*out, hidden), pad the logits layer to a lane.
    lw1s_p = _pad2d(params["lp_w1"][:out_c], c_p, h_p, bf16)
    lw1d_p = _pad2d(params["lp_w1"][out_c:], c_p, h_p, bf16)
    lw2_p = _pad2d(params["lp_w2"], h_p, LANE, bf16)                     # [hidden, 1] -> [Hp, 128]

    # Pack the four bias rows into a single (8, W) f32 tile (one DMA instead of four).
    bias_w = max(h_p, c_p, LANE)
    bias_pack = jnp.zeros((8, bias_w), f32)
    bias_pack = bias_pack.at[0, :hidden].set(params["b1"].astype(f32))
    bias_pack = bias_pack.at[1, :out_c].set(params["b2"].astype(f32))
    bias_pack = bias_pack.at[2, :hidden].set(params["lp_b1"].astype(f32))
    bias_pack = bias_pack.at[3, :1].set(params["lp_b2"].astype(f32))

    vmem = pl.BlockSpec(memory_space=pltpu.MemorySpace.VMEM)             # small graph: everything resident

    @jax.jit
    def forward(x, pred_edge_index):
        e = pred_edge_index.shape[1]
        e_p = _round_up(max(e, 16), 16)                                  # bf16 sublane pack (16, 128)

        x_p = _pad2d(x, n_p, f_p, bf16)

        # Stacked one-hot selector [src rows ; dst rows], built directly in bf16.
        idx = jnp.concatenate([pred_edge_index[0], pred_edge_index[1]]).astype(jnp.int32)
        rows = jnp.concatenate([jnp.arange(e), e_p + jnp.arange(e)])
        sel = jnp.zeros((2 * e_p, n_p), bf16).at[rows, idx].set(jnp.bfloat16(1.0))

        out = pl.pallas_call(
            _fused_gcn_link_kernel,
            out_shape=jax.ShapeDtypeStruct((e_p, LANE), f32),
            in_specs=[vmem] * 9,
            out_specs=vmem,
            compiler_params=pltpu.CompilerParams(vmem_limit_bytes=32 * 1024 * 1024),
        )(adj_p, x_p, w1_p, w2_p, sel, lw1s_p, lw1d_p, lw2_p, bias_pack)

        return out[:e, 0:1]                                              # column 0 holds the real probabilities

    return forward


# ----------------------------- main -----------------------------
if __name__ == "__main__":
    in_channels, hidden_channels, out_channels = 8, 16, 8
    n_nodes, n_edges, n_pred_edges = 16, 40, 8

    key = jax.random.PRNGKey(0)
    ks = jax.random.split(key, 12)
    s = 0.1  # small deterministic init scale

    params = {
        # conv1: GCNConv(in, hidden)
        "w1": (jax.random.normal(ks[0], (in_channels, hidden_channels)) * s).astype(jnp.float32),
        "b1": (jax.random.normal(ks[1], (hidden_channels,)) * s).astype(jnp.float32),
        # conv2: GCNConv(hidden, out)
        "w2": (jax.random.normal(ks[2], (hidden_channels, out_channels)) * s).astype(jnp.float32),
        "b2": (jax.random.normal(ks[3], (out_channels,)) * s).astype(jnp.float32),
        # link predictor: Linear(2*out, hidden) -> ReLU -> Dropout -> Linear(hidden, 1)
        "lp_w1": (jax.random.normal(ks[4], (2 * out_channels, hidden_channels)) * s).astype(jnp.float32),
        "lp_b1": (jax.random.normal(ks[5], (hidden_channels,)) * s).astype(jnp.float32),
        "lp_w2": (jax.random.normal(ks[6], (hidden_channels, 1)) * s).astype(jnp.float32),
        "lp_b2": (jax.random.normal(ks[7], (1,)) * s).astype(jnp.float32),
    }

    x = jax.random.normal(ks[8], (n_nodes, in_channels)).astype(jnp.float32)
    edge_index = jnp.stack([
        jax.random.randint(ks[9], (n_edges,), 0, n_nodes),
        jax.random.randint(ks[10], (n_edges,), 0, n_nodes),
    ]).astype(jnp.int32)
    pred_edge_index = jnp.stack([
        jax.random.randint(ks[11], (n_pred_edges,), 0, n_nodes),
        jax.random.randint(jax.random.fold_in(ks[11], 1), (n_pred_edges,), 0, n_nodes),
    ]).astype(jnp.int32)

    forward = make_gcn_link_predictor(params, edge_index, n_nodes)       # one-time prep (hoisted invariants)
    link_pred = forward(x, pred_edge_index)                              # jitted per-call path
    link_pred = jax.block_until_ready(link_pred)

    assert link_pred.shape == (n_pred_edges, 1)
    assert bool(jnp.all(jnp.isfinite(link_pred)))
    assert bool(jnp.all((link_pred >= 0.0) & (link_pred <= 1.0)))
    print("KERNEL_OK")
</pallas_src>

<mosaic_0001>
module attributes {stable_mosaic.version = 11 : i64} {
  func.func @_fused_gcn_link_kernel(%arg0: memref<128x128xbf16, #tpu.memory_space<vmem>>, %arg1: memref<128x128xbf16, #tpu.memory_space<vmem>>, %arg2: memref<128x128xbf16, #tpu.memory_space<vmem>>, %arg3: memref<128x128xbf16, #tpu.memory_space<vmem>>, %arg4: memref<32x128xbf16, #tpu.memory_space<vmem>>, %arg5: memref<128x128xbf16, #tpu.memory_space<vmem>>, %arg6: memref<128x128xbf16, #tpu.memory_space<vmem>>, %arg7: memref<128x128xbf16, #tpu.memory_space<vmem>>, %arg8: memref<8x128xf32, #tpu.memory_space<vmem>>, %arg9: memref<16x128xf32, #tpu.memory_space<vmem>>) attributes {dimension_semantics = [], scalar_prefetch = 0 : i64, scratch_operands = 0 : i64, tpu.core_type = #tpu.core_type<tc>} {
    %c0 = arith.constant 0 : index
    %c0_0 = arith.constant 0 : index
    %0 = vector.load %arg8[%c0, %c0_0] : memref<8x128xf32, #tpu.memory_space<vmem>>, vector<1x128xf32>
    %c1 = arith.constant 1 : index
    %c0_1 = arith.constant 0 : index
    %1 = vector.load %arg8[%c1, %c0_1] : memref<8x128xf32, #tpu.memory_space<vmem>>, vector<1x128xf32>
    %c2 = arith.constant 2 : index
    %c0_2 = arith.constant 0 : index
    %2 = vector.load %arg8[%c2, %c0_2] : memref<8x128xf32, #tpu.memory_space<vmem>>, vector<1x128xf32>
    %c3 = arith.constant 3 : index
    %c0_3 = arith.constant 0 : index
    %3 = vector.load %arg8[%c3, %c0_3] : memref<8x128xf32, #tpu.memory_space<vmem>>, vector<1x128xf32>
    %c0_4 = arith.constant 0 : index
    %c0_5 = arith.constant 0 : index
    %4 = vector.load %arg0[%c0_4, %c0_5] : memref<128x128xbf16, #tpu.memory_space<vmem>>, vector<128x128xbf16>
    %c0_6 = arith.constant 0 : index
    %c0_7 = arith.constant 0 : index
    %5 = vector.load %arg1[%c0_6, %c0_7] : memref<128x128xbf16, #tpu.memory_space<vmem>>, vector<128x128xbf16>
    %c0_8 = arith.constant 0 : index
    %c0_9 = arith.constant 0 : index
    %6 = vector.load %arg2[%c0_8, %c0_9] : memref<128x128xbf16, #tpu.memory_space<vmem>>, vector<128x128xbf16>
    %cst = arith.constant dense<0.000000e+00> : vector<128x128xf32>
    %7 = tpu.matmul %5, %6, %cst {dimension_numbers = #tpu.dot_dimension_numbers<[1], [0], [0], [1], [0, 0, 1, 1], [], []>} : vector<128x128xbf16>, vector<128x128xbf16>, vector<128x128xf32> -> vector<128x128xf32>
    %8 = arith.truncf %7 : vector<128x128xf32> to vector<128x128xbf16>
    %cst_10 = arith.constant dense<0.000000e+00> : vector<128x128xf32>
    %9 = tpu.matmul %4, %8, %cst_10 {dimension_numbers = #tpu.dot_dimension_numbers<[1], [0], [0], [1], [0, 0, 1, 1], [], []>} : vector<128x128xbf16>, vector<128x128xbf16>, vector<128x128xf32> -> vector<128x128xf32>
    %10 = vector.broadcast %0 : vector<1x128xf32> to vector<128x128xf32>
    %11 = arith.addf %9, %10 : vector<128x128xf32>
    %cst_11 = arith.constant 0.000000e+00 : f32
    %12 = vector.broadcast %cst_11 : f32 to vector<128x128xf32>
    %13 = arith.maximumf %11, %12 : vector<128x128xf32>
    %14 = arith.truncf %13 : vector<128x128xf32> to vector<128x128xbf16>
    %c0_12 = arith.constant 0 : index
    %c0_13 = arith.constant 0 : index
    %15 = vector.load %arg3[%c0_12, %c0_13] : memref<128x128xbf16, #tpu.memory_space<vmem>>, vector<128x128xbf16>
    %cst_14 = arith.constant dense<0.000000e+00> : vector<128x128xf32>
    %16 = tpu.matmul %14, %15, %cst_14 {dimension_numbers = #tpu.dot_dimension_numbers<[1], [0], [0], [1], [0, 0, 1, 1], [], []>} : vector<128x128xbf16>, vector<128x128xbf16>, vector<128x128xf32> -> vector<128x128xf32>
    %17 = arith.truncf %16 : vector<128x128xf32> to vector<128x128xbf16>
    %cst_15 = arith.constant dense<0.000000e+00> : vector<128x128xf32>
    %18 = tpu.matmul %4, %17, %cst_15 {dimension_numbers = #tpu.dot_dimension_numbers<[1], [0], [0], [1], [0, 0, 1, 1], [], []>} : vector<128x128xbf16>, vector<128x128xbf16>, vector<128x128xf32> -> vector<128x128xf32>
    %19 = vector.broadcast %1 : vector<1x128xf32> to vector<128x128xf32>
    %20 = arith.addf %18, %19 : vector<128x128xf32>
    %c0_16 = arith.constant 0 : index
    %c0_17 = arith.constant 0 : index
    %21 = vector.load %arg4[%c0_16, %c0_17] : memref<32x128xbf16, #tpu.memory_space<vmem>>, vector<32x128xbf16>
    %22 = arith.truncf %20 : vector<128x128xf32> to vector<128x128xbf16>
    %cst_18 = arith.constant dense<0.000000e+00> : vector<32x128xf32>
    %23 = tpu.matmul %21, %22, %cst_18 {dimension_numbers = #tpu.dot_dimension_numbers<[1], [0], [0], [1], [0, 0, 1, 1], [], []>} : vector<32x128xbf16>, vector<128x128xbf16>, vector<32x128xf32> -> vector<32x128xf32>
    %24 = vector.extract_strided_slice %23 {offsets = [0, 0], sizes = [16, 128], strides = [1, 1]} : vector<32x128xf32> to vector<16x128xf32>
    %25 = arith.truncf %24 : vector<16x128xf32> to vector<16x128xbf16>
    %26 = vector.extract_strided_slice %23 {offsets = [16, 0], sizes = [16, 128], strides = [1, 1]} : vector<32x128xf32> to vector<16x128xf32>
    %27 = arith.truncf %26 : vector<16x128xf32> to vector<16x128xbf16>
    %c0_19 = arith.constant 0 : index
    %c0_20 = arith.constant 0 : index
    %28 = vector.load %arg5[%c0_19, %c0_20] : memref<128x128xbf16, #tpu.memory_space<vmem>>, vector<128x128xbf16>
    %cst_21 = arith.constant dense<0.000000e+00> : vector<16x128xf32>
    %29 = tpu.matmul %25, %28, %cst_21 {dimension_numbers = #tpu.dot_dimension_numbers<[1], [0], [0], [1], [0, 0, 1, 1], [], []>} : vector<16x128xbf16>, vector<128x128xbf16>, vector<16x128xf32> -> vector<16x128xf32>
    %c0_22 = arith.constant 0 : index
    %c0_23 = arith.constant 0 : index
    %30 = vector.load %arg6[%c0_22, %c0_23] : memref<128x128xbf16, #tpu.memory_space<vmem>>, vector<128x128xbf16>
    %cst_24 = arith.constant dense<0.000000e+00> : vector<16x128xf32>
    %31 = tpu.matmul %27, %30, %cst_24 {dimension_numbers = #tpu.dot_dimension_numbers<[1], [0], [0], [1], [0, 0, 1, 1], [], []>} : vector<16x128xbf16>, vector<128x128xbf16>, vector<16x128xf32> -> vector<16x128xf32>
    %32 = arith.addf %29, %31 : vector<16x128xf32>
    %33 = vector.broadcast %2 : vector<1x128xf32> to vector<16x128xf32>
    %34 = arith.addf %32, %33 : vector<16x128xf32>
    %cst_25 = arith.constant 0.000000e+00 : f32
    %35 = vector.broadcast %cst_25 : f32 to vector<16x128xf32>
    %36 = arith.maximumf %34, %35 : vector<16x128xf32>
    %37 = arith.truncf %36 : vector<16x128xf32> to vector<16x128xbf16>
    %c0_26 = arith.constant 0 : index
    %c0_27 = arith.constant 0 : index
    %38 = vector.load %arg7[%c0_26, %c0_27] : memref<128x128xbf16, #tpu.memory_space<vmem>>, vector<128x128xbf16>
    %cst_28 = arith.constant dense<0.000000e+00> : vector<16x128xf32>
    %39 = tpu.matmul %37, %38, %cst_28 {dimension_numbers = #tpu.dot_dimension_numbers<[1], [0], [0], [1], [0, 0, 1, 1], [], []>} : vector<16x128xbf16>, vector<128x128xbf16>, vector<16x128xf32> -> vector<16x128xf32>
    %40 = vector.broadcast %3 : vector<1x128xf32> to vector<16x128xf32>
    %41 = arith.addf %39, %40 : vector<16x128xf32>
    %cst_29 = arith.constant 0.000000e+00 : f32
    %42 = vector.broadcast %cst_29 : f32 to vector<16x128xf32>
    %43 = arith.subf %42, %41 : vector<16x128xf32>
    %44 = math.exp %43 : vector<16x128xf32>
    %cst_30 = arith.constant 1.000000e+00 : f32
    %45 = vector.broadcast %cst_30 : f32 to vector<16x128xf32>
    %46 = arith.addf %45, %44 : vector<16x128xf32>
    %47 = tpu.reciprocal %46 {approx = true} : vector<16x128xf32> -> vector<16x128xf32>
    %c0_31 = arith.constant 0 : index
    %c0_32 = arith.constant 0 : index
    %48 = vector.load %arg9[%c0_31, %c0_32] : memref<16x128xf32, #tpu.memory_space<vmem>>, vector<16x128xf32>
    tpu.vector_store %arg9[%c0_31, %c0_32], %47 {strides = array<i32>} : memref<16x128xf32, #tpu.memory_space<vmem>>, vector<16x128xf32>,
    return
  }
}

</mosaic_0001>

<llo_original>
// kernel: forward.1
$region0: #{forward.1}
  #allocation0 [shape = 'u32[]', space=smem, size = 0x4, offset = 0x4, fixed_abs, tag = 'smem constant byte address 0x4 - core index']
  #allocation1 [shape = 'u32[144,128]{1,0:T(1,128)}', space=vmem, size = 0x12000, scoped, tag = 'internal scratch']
  %s0 = inlined_call_operand.vmem [shape: bf16[128,128], index: 0, kind: input, shape index: {}]
  %s1 = inlined_call_operand.vmem [shape: bf16[128,128], index: 1, kind: input, shape index: {}]
  %s2 = inlined_call_operand.vmem [shape: bf16[128,128], index: 2, kind: input, shape index: {}]
  %s3 = inlined_call_operand.vmem [shape: bf16[128,128], index: 3, kind: input, shape index: {}]
  %s4 = inlined_call_operand.vmem [shape: bf16[32,128], index: 4, kind: input, shape index: {}]
  %s5 = inlined_call_operand.vmem [shape: bf16[128,128], index: 5, kind: input, shape index: {}]
  %s6 = inlined_call_operand.vmem [shape: bf16[128,128], index: 6, kind: input, shape index: {}]
  %s7 = inlined_call_operand.vmem [shape: bf16[128,128], index: 7, kind: input, shape index: {}]
  %s8 = inlined_call_operand.vmem [shape: f32[8,128], index: 8, kind: input, shape index: {}]
  %s9 = inlined_call_operand.vmem [shape: f32[16,128], index: 9, kind: output, shape index: {}]
  %s10 = sld [smem:[#allocation0]]
  $region46: #{forward.1} parent=0
    _
  %s12 = ssub.s32 1, %s10
  %s13 = scalar_select 0, %s12, %s10
  // Predicated region
  $region2: #{forward.1} parent=0 // pred_check
    _
  $region3: #{forward.1} parent=0 // pred_check_branch
    %15 = sbr.rel (0) target = $region5
  $region4: #{forward.1} parent=0 // pred_region
    _
  $region5: #{forward.1} parent=0 // pred_fallthru
    _
  // Predicated region
  $region6: #{forward.1} parent=0 // pred_check
    _
  $region7: #{forward.1} parent=0 // pred_check_branch
    %17 = sbr.rel (0) target = $region9
  $region8: #{forward.1} parent=0 // pred_region
    _
  $region9: #{forward.1} parent=0 // pred_fallthru
    _
  // Predicated region
  $region10: #{forward.1} parent=0 // pred_check
    _
  $region11: #{forward.1} parent=0 // pred_check_branch
    %19 = sbr.rel (0) target = $region13
  $region12: #{forward.1} parent=0 // pred_region
    _
  $region13: #{forward.1} parent=0 // pred_fallthru
    _
  // Predicated region
  $region14: #{forward.1} parent=0 // pred_check
    _
  $region15: #{forward.1} parent=0 // pred_check_branch
    %21 = sbr.rel (0) target = $region17
  $region16: #{forward.1} parent=0 // pred_region
    _
  $region17: #{forward.1} parent=0 // pred_fallthru
    _
  // Predicated region
  $region18: #{forward.1} parent=0 // pred_check
    _
  $region19: #{forward.1} parent=0 // pred_check_branch
    %23 = sbr.rel (0) target = $region21
  $region20: #{forward.1} parent=0 // pred_region
    _
  $region21: #{forward.1} parent=0 // pred_fallthru
    _
  // Predicated region
  $region22: #{forward.1} parent=0 // pred_check
    _
  $region23: #{forward.1} parent=0 // pred_check_branch
    %25 = sbr.rel (0) target = $region25
  $region24: #{forward.1} parent=0 // pred_region
    _
  $region25: #{forward.1} parent=0 // pred_fallthru
    _
  // Predicated region
  $region26: #{forward.1} parent=0 // pred_check
    _
  $region27: #{forward.1} parent=0 // pred_check_branch
    %27 = sbr.rel (0) target = $region29
  $region28: #{forward.1} parent=0 // pred_region
    _
  $region29: #{forward.1} parent=0 // pred_fallthru
    _
  // Predicated region
  $region30: #{forward.1} parent=0 // pred_check
    _
  $region31: #{forward.1} parent=0 // pred_check_branch
    %29 = sbr.rel (0) target = $region33
  $region32: #{forward.1} parent=0 // pred_region
    _
  $region33: #{forward.1} parent=0 // pred_fallthru
    _
  // Predicated region
  $region34: #{forward.1} parent=0 // pred_check
    _
  $region35: #{forward.1} parent=0 // pred_check_branch
    %31 = sbr.rel (0) target = $region37
  $region36: #{forward.1} parent=0 // pred_region
    _
  $region37: #{forward.1} parent=0 // pred_fallthru
    _
  %v33 = vld [vmem:[%s8] sm:$0x1]
  %v34 = vld [vmem:[%s8 + $0x1] sm:$0x1]
  %v35 = vld [vmem:[%s8 + $0x2] sm:$0x1]
  %v36 = vld [vmem:[%s8 + $0x3] sm:$0x1]
  %v37 = vld [vmem:[%s0] sm:$0xf]
  %v38 = vld [vmem:[%s0 + $0x4] sm:$0xf]
  %v39 = vld [vmem:[%s0 + $0x8] sm:$0xf]
  %v40 = vld [vmem:[%s0 + $0xc] sm:$0xf]
  %v41 = vld [vmem:[%s0 + $0x10] sm:$0xf]
  %v42 = vld [vmem:[%s0 + $0x14] sm:$0xf]
  %v43 = vld [vmem:[%s0 + $0x18] sm:$0xf]
  %v44 = vld [vmem:[%s0 + $0x1c] sm:$0xf]
  %v45 = vld [vmem:[%s0 + $0x20] sm:$0xf]
  %v46 = vld [vmem:[%s0 + $0x24] sm:$0xf]
  %v47 = vld [vmem:[%s0 + $0x28] sm:$0xf]
  %v48 = vld [vmem:[%s0 + $0x2c] sm:$0xf]
  %v49 = vld [vmem:[%s0 + $0x30] sm:$0xf]
  %v50 = vld [vmem:[%s0 + $0x34] sm:$0xf]
  %v51 = vld [vmem:[%s0 + $0x38] sm:$0xf]
  %v52 = vld [vmem:[%s0 + $0x3c] sm:$0xf]
  %v53 = vld [vmem:[%s1] sm:$0xf]
  %v54 = vld [vmem:[%s1 + $0x4] sm:$0xf]
  %v55 = vld [vmem:[%s1 + $0x8] sm:$0xf]
  %v56 = vld [vmem:[%s1 + $0xc] sm:$0xf]
  %v57 = vld [vmem:[%s1 + $0x10] sm:$0xf]
  %v58 = vld [vmem:[%s1 + $0x14] sm:$0xf]
  %v59 = vld [vmem:[%s1 + $0x18] sm:$0xf]
  %v60 = vld [vmem:[%s1 + $0x1c] sm:$0xf]
  %v61 = vld [vmem:[%s1 + $0x20] sm:$0xf]
  %v62 = vld [vmem:[%s1 + $0x24] sm:$0xf]
  %v63 = vld [vmem:[%s1 + $0x28] sm:$0xf]
  %v64 = vld [vmem:[%s1 + $0x2c] sm:$0xf]
  %v65 = vld [vmem:[%s1 + $0x30] sm:$0xf]
  %v66 = vld [vmem:[%s1 + $0x34] sm:$0xf]
  %v67 = vld [vmem:[%s1 + $0x38] sm:$0xf]
  %v68 = vld [vmem:[%s1 + $0x3c] sm:$0xf]
  %v69 = vld [vmem:[%s2] sm:$0xf]
  %v70 = vld [vmem:[%s2 + $0x4] sm:$0xf]
  %v71 = vld [vmem:[%s2 + $0x8] sm:$0xf]
  %v72 = vld [vmem:[%s2 + $0xc] sm:$0xf]
  %v73 = vld [vmem:[%s2 + $0x10] sm:$0xf]
  %v74 = vld [vmem:[%s2 + $0x14] sm:$0xf]
  %v75 = vld [vmem:[%s2 + $0x18] sm:$0xf]
  %v76 = vld [vmem:[%s2 + $0x1c] sm:$0xf]
  %v77 = vld [vmem:[%s2 + $0x20] sm:$0xf]
  %v78 = vld [vmem:[%s2 + $0x24] sm:$0xf]
  %v79 = vld [vmem:[%s2 + $0x28] sm:$0xf]
  %v80 = vld [vmem:[%s2 + $0x2c] sm:$0xf]
  %v81 = vld [vmem:[%s2 + $0x30] sm:$0xf]
  %v82 = vld [vmem:[%s2 + $0x34] sm:$0xf]
  %v83 = vld [vmem:[%s2 + $0x38] sm:$0xf]
  %v84 = vld [vmem:[%s2 + $0x3c] sm:$0xf]
  %v101 = vunpack.c.l.b16 %v53
  %v102 = vunpack.c.l.b16 %v54
  %v103 = vunpack.c.l.b16 %v55
  %v104 = vunpack.c.l.b16 %v56
  %v105 = vunpack.c.l.b16 %v57
  %v106 = vunpack.c.l.b16 %v58
  %v107 = vunpack.c.l.b16 %v59
  %v108 = vunpack.c.l.b16 %v60
  %v109 = vunpack.c.l.b16 %v61
  %v110 = vunpack.c.l.b16 %v62
  %v111 = vunpack.c.l.b16 %v63
  %v112 = vunpack.c.l.b16 %v64
  %v113 = vunpack.c.l.b16 %v65
  %v114 = vunpack.c.l.b16 %v66
  %v115 = vunpack.c.l.b16 %v67
  %v116 = vunpack.c.l.b16 %v68
  %v117 = vpack.c.b16 %v102, %v101
  %v118 = vpack.c.b16 %v104, %v103
  %v119 = vpack.c.b16 %v106, %v105
  %v120 = vpack.c.b16 %v108, %v107
  %v121 = vpack.c.b16 %v110, %v109
  %v122 = vpack.c.b16 %v112, %v111
  %v123 = vpack.c.b16 %v114, %v113
  %v124 = vpack.c.b16 %v116, %v115
  %v149 = vunpack.c.l.b16 %v69
  %v150 = vunpack.c.l.b16 %v70
  %v151 = vunpack.c.l.b16 %v71
  %v152 = vunpack.c.l.b16 %v72
  %v153 = vunpack.c.l.b16 %v73
  %v154 = vunpack.c.l.b16 %v74
  %v155 = vunpack.c.l.b16 %v75
  %v156 = vunpack.c.l.b16 %v76
  %v157 = vunpack.c.l.b16 %v77
  %v158 = vunpack.c.l.b16 %v78
  %v159 = vunpack.c.l.b16 %v79
  %v160 = vunpack.c.l.b16 %v80
  %v161 = vunpack.c.l.b16 %v81
  %v162 = vunpack.c.l.b16 %v82
  %v163 = vunpack.c.l.b16 %v83
  %v164 = vunpack.c.l.b16 %v84
  %v165 = vpack.c.b16 %v150, %v149
  %v166 = vpack.c.b16 %v152, %v151
  %v167 = vpack.c.b16 %v154, %v153
  %v168 = vpack.c.b16 %v156, %v155
  %v169 = vpack.c.b16 %v158, %v157
  %v170 = vpack.c.b16 %v160, %v159
  %v171 = vpack.c.b16 %v162, %v161
  %v172 = vpack.c.b16 %v164, %v163
  %181 = vmatprep.subr.bf16.mxu0 0
  %182 = vmatpush1.bf16.msra.mxu0 %v165
  %183 = vmatprep.subr.bf16.mxu0 0
  %184 = vmatpush1.bf16.msra.mxu0 %v166
  %185 = vmatprep.subr.bf16.mxu0 0
  %186 = vmatpush1.bf16.msra.mxu0 %v167
  %187 = vmatprep.subr.bf16.mxu0 0
  %188 = vmatpush1.bf16.msra.mxu0 %v168
  %189 = vmatprep.subr.bf16.mxu0 0
  %190 = vmatpush1.bf16.msra.mxu0 %v169
  %191 = vmatprep.subr.bf16.mxu0 0
  %192 = vmatpush1.bf16.msra.mxu0 %v170
  %193 = vmatprep.subr.bf16.mxu0 0
  %194 = vmatpush1.bf16.msra.mxu0 %v171
  %195 = vmatprep.subr.bf16.mxu0 0
  %196 = vmatpush1.bf16.msra.mxu0 %v172
  %197 = vmatprep.subr.bf16.mxu0 0
  %198 = vmatpush1.bf16.msra.mxu0 0
  %199 = vmatprep.subr.bf16.mxu0 0
  %200 = vmatpush1.bf16.msra.mxu0 0
  %201 = vmatprep.subr.bf16.mxu0 0
  %202 = vmatpush1.bf16.msra.mxu0 0
  %203 = vmatprep.subr.bf16.mxu0 0
  %204 = vmatpush1.bf16.msra.mxu0 0
  %205 = vmatprep.subr.bf16.mxu0 0
  %206 = vmatpush1.bf16.msra.mxu0 0
  %207 = vmatprep.subr.bf16.mxu0 0
  %208 = vmatpush1.bf16.msra.mxu0 0
  %209 = vmatprep.subr.bf16.mxu0 0
  %210 = vmatpush1.bf16.msra.mxu0 0
  %211 = vmatprep.subr.bf16.mxu0 0
  %212 = vmatpush1.bf16.msra.mxu0 0
  %213 = vmatprep.mubr.bf16.mxu0 0
  %214 = vmatmul.mubr.bf16.gmra.mrb[0].mxu0 %v117
  %v215 = vpop.f32.mrb[0].mxu0
  %v216 = vadd.f32 0.0, %v215
  %v217 = vpop.f32.mrb[0].mxu0
  %v218 = vpop.f32.mrb[0].mxu0
  %v219 = vadd.f32 0.0, %v218
  %v220 = vpop.f32.mrb[0].mxu0
  %221 = vmatprep.mubr.bf16.mxu0 0
  %222 = vmatmul.mubr.bf16.gmra.mrb[0].mxu0 %v118
  %v223 = vpop.f32.mrb[0].mxu0
  %v224 = vadd.f32 0.0, %v223
  %v225 = vpop.f32.mrb[0].mxu0
  %v226 = vpop.f32.mrb[0].mxu0
  %v227 = vadd.f32 0.0, %v226
  %v228 = vpop.f32.mrb[0].mxu0
  %229 = vmatprep.mubr.bf16.mxu0 0
  %230 = vmatmul.mubr.bf16.gmra.mrb[0].mxu0 %v119
  %v231 = vpop.f32.mrb[0].mxu0
  %v232 = vadd.f32 0.0, %v231
  %v233 = vpop.f32.mrb[0].mxu0
  %v234 = vpop.f32.mrb[0].mxu0
  %v235 = vadd.f32 0.0, %v234
  %v236 = vpop.f32.mrb[0].mxu0
  %237 = vmatprep.mubr.bf16.mxu0 0
  %238 = vmatmul.mubr.bf16.gmra.mrb[0].mxu0 %v120
  %v239 = vpop.f32.mrb[0].mxu0
  %v240 = vadd.f32 0.0, %v239
  %v241 = vpop.f32.mrb[0].mxu0
  %v242 = vpop.f32.mrb[0].mxu0
  %v243 = vadd.f32 0.0, %v242
  %v244 = vpop.f32.mrb[0].mxu0
  %245 = vmatprep.mubr.bf16.mxu0 0
  %246 = vmatmul.mubr.bf16.gmra.mrb[0].mxu0 %v121
  %v247 = vpop.f32.mrb[0].mxu0
  %v248 = vadd.f32 0.0, %v247
  %v249 = vpop.f32.mrb[0].mxu0
  %v250 = vpop.f32.mrb[0].mxu0
  %v251 = vadd.f32 0.0, %v250
  %v252 = vpop.f32.mrb[0].mxu0
  %253 = vmatprep.mubr.bf16.mxu0 0
  %254 = vmatmul.mubr.bf16.gmra.mrb[0].mxu0 %v122
  %v255 = vpop.f32.mrb[0].mxu0
  %v256 = vadd.f32 0.0, %v255
  %v257 = vpop.f32.mrb[0].mxu0
  %v258 = vpop.f32.mrb[0].mxu0
  %v259 = vadd.f32 0.0, %v258
  %v260 = vpop.f32.mrb[0].mxu0
  %261 = vmatprep.mubr.bf16.mxu0 0
  %262 = vmatmul.mubr.bf16.gmra.mrb[0].mxu0 %v123
  %v263 = vpop.f32.mrb[0].mxu0
  %v264 = vadd.f32 0.0, %v263
  %v265 = vpop.f32.mrb[0].mxu0
  %v266 = vpop.f32.mrb[0].mxu0
  %v267 = vadd.f32 0.0, %v266
  %v268 = vpop.f32.mrb[0].mxu0
  %269 = vmatprep.mubr.bf16.mxu0 0
  %270 = vmatmul.mubr.bf16.gmra.mrb[0].mxu0 %v124
  %v271 = vpop.f32.mrb[0].mxu0
  %v272 = vadd.f32 0.0, %v271
  %v273 = vpop.f32.mrb[0].mxu0
  %v274 = vpop.f32.mrb[0].mxu0
  %v275 = vadd.f32 0.0, %v274
  %v276 = vpop.f32.mrb[0].mxu0
  %277 = vdwg.mxu0
  %v278 = vpack.c.bf16 %v219, %v216
  %v279 = vpack.c.bf16 %v227, %v224
  %v280 = vpack.c.bf16 %v235, %v232
  %v281 = vpack.c.bf16 %v243, %v240
  %v282 = vpack.c.bf16 %v251, %v248
  %v283 = vpack.c.bf16 %v259, %v256
  %v284 = vpack.c.bf16 %v267, %v264
  %v285 = vpack.c.bf16 %v275, %v272
  %v286 = vlaneseq
  %v287 = vshrl.u32 %v286, 7
  %v288 = vsub.s32 0, %v287
  %v289 = vrot.slane %v33, %v288
  %v306 = vunpack.c.l.b16 %v37
  %v307 = vunpack.c.l.b16 %v38
  %v308 = vunpack.c.l.b16 %v39
  %v309 = vunpack.c.l.b16 %v40
  %v310 = vunpack.c.l.b16 %v41
  %v311 = vunpack.c.l.b16 %v42
  %v312 = vunpack.c.l.b16 %v43
  %v313 = vunpack.c.l.b16 %v44
  %v314 = vunpack.c.l.b16 %v45
  %v315 = vunpack.c.l.b16 %v46
  %v316 = vunpack.c.l.b16 %v47
  %v317 = vunpack.c.l.b16 %v48
  %v318 = vunpack.c.l.b16 %v49
  %v319 = vunpack.c.l.b16 %v50
  %v320 = vunpack.c.l.b16 %v51
  %v321 = vunpack.c.l.b16 %v52
  %v322 = vpack.c.b16 %v307, %v306
  %v323 = vpack.c.b16 %v309, %v308
  %v324 = vpack.c.b16 %v311, %v310
  %v325 = vpack.c.b16 %v313, %v312
  %v326 = vpack.c.b16 %v315, %v314
  %v327 = vpack.c.b16 %v317, %v316
  %v328 = vpack.c.b16 %v319, %v318
  %v329 = vpack.c.b16 %v321, %v320
  %338 = vmatprep.subr.bf16.mxu0 0
  %339 = vmatpush1.bf16.msra.mxu0 %v278
  %340 = vmatprep.subr.bf16.mxu0 0
  %341 = vmatpush1.bf16.msra.mxu0 %v279
  %342 = vmatprep.subr.bf16.mxu0 0
  %343 = vmatpush1.bf16.msra.mxu0 %v280
  %344 = vmatprep.subr.bf16.mxu0 0
  %345 = vmatpush1.bf16.msra.mxu0 %v281
  %346 = vmatprep.subr.bf16.mxu0 0
  %347 = vmatpush1.bf16.msra.mxu0 %v282
  %348 = vmatprep.subr.bf16.mxu0 0
  %349 = vmatpush1.bf16.msra.mxu0 %v283
  %350 = vmatprep.subr.bf16.mxu0 0
  %351 = vmatpush1.bf16.msra.mxu0 %v284
  %352 = vmatprep.subr.bf16.mxu0 0
  %353 = vmatpush1.bf16.msra.mxu0 %v285
  %354 = vmatprep.subr.bf16.mxu0 0
  %355 = vmatpush1.bf16.msra.mxu0 0
  %356 = vmatprep.subr.bf16.mxu0 0
  %357 = vmatpush1.bf16.msra.mxu0 0
  %358 = vmatprep.subr.bf16.mxu0 0
  %359 = vmatpush1.bf16.msra.mxu0 0
  %360 = vmatprep.subr.bf16.mxu0 0
  %361 = vmatpush1.bf16.msra.mxu0 0
  %362 = vmatprep.subr.bf16.mxu0 0
  %363 = vmatpush1.bf16.msra.mxu0 0
  %364 = vmatprep.subr.bf16.mxu0 0
  %365 = vmatpush1.bf16.msra.mxu0 0
  %366 = vmatprep.subr.bf16.mxu0 0
  %367 = vmatpush1.bf16.msra.mxu0 0
  %368 = vmatprep.subr.bf16.mxu0 0
  %369 = vmatpush1.bf16.msra.mxu0 0
  %370 = vmatprep.mubr.bf16.mxu0 0
  %371 = vmatmul.mubr.bf16.gmra.mrb[0].mxu0 %v322
  %v372 = vpop.f32.mrb[0].mxu0
  %v373 = vadd.f32 %v289, %v372
  %v374 = vpop.f32.mrb[0].mxu0
  %v375 = vpop.f32.mrb[0].mxu0
  %v376 = vadd.f32 %v289, %v375
  %v377 = vpop.f32.mrb[0].mxu0
  %378 = vmatprep.mubr.bf16.mxu0 0
  %379 = vmatmul.mubr.bf16.gmra.mrb[0].mxu0 %v323
  %v380 = vpop.f32.mrb[0].mxu0
  %v381 = vadd.f32 %v289, %v380
  %v382 = vpop.f32.mrb[0].mxu0
  %v383 = vpop.f32.mrb[0].mxu0
  %v384 = vadd.f32 %v289, %v383
  %v385 = vpop.f32.mrb[0].mxu0
  %386 = vmatprep.mubr.bf16.mxu0 0
  %387 = vmatmul.mubr.bf16.gmra.mrb[0].mxu0 %v324
  %v388 = vpop.f32.mrb[0].mxu0
  %v389 = vadd.f32 %v289, %v388
  %v390 = vpop.f32.mrb[0].mxu0
  %v391 = vpop.f32.mrb[0].mxu0
  %v392 = vadd.f32 %v289, %v391
  %v393 = vpop.f32.mrb[0].mxu0
  %394 = vmatprep.mubr.bf16.mxu0 0
  %395 = vmatmul.mubr.bf16.gmra.mrb[0].mxu0 %v325
  %v396 = vpop.f32.mrb[0].mxu0
  %v397 = vadd.f32 %v289, %v396
  %v398 = vpop.f32.mrb[0].mxu0
  %v399 = vpop.f32.mrb[0].mxu0
  %v400 = vadd.f32 %v289, %v399
  %v401 = vpop.f32.mrb[0].mxu0
  %402 = vmatprep.mubr.bf16.mxu0 0
  %403 = vmatmul.mubr.bf16.gmra.mrb[0].mxu0 %v326
  %v404 = vpop.f32.mrb[0].mxu0
  %v405 = vadd.f32 %v289, %v404
  %v406 = vpop.f32.mrb[0].mxu0
  %v407 = vpop.f32.mrb[0].mxu0
  %v408 = vadd.f32 %v289, %v407
  %v409 = vpop.f32.mrb[0].mxu0
  %410 = vmatprep.mubr.bf16.mxu0 0
  %411 = vmatmul.mubr.bf16.gmra.mrb[0].mxu0 %v327
  %v412 = vpop.f32.mrb[0].mxu0
  %v413 = vadd.f32 %v289, %v412
  %v414 = vpop.f32.mrb[0].mxu0
  %v415 = vpop.f32.mrb[0].mxu0
  %v416 = vadd.f32 %v289, %v415
  %v417 = vpop.f32.mrb[0].mxu0
  %418 = vmatprep.mubr.bf16.mxu0 0
  %419 = vmatmul.mubr.bf16.gmra.mrb[0].mxu0 %v328
  %v420 = vpop.f32.mrb[0].mxu0
  %v421 = vadd.f32 %v289, %v420
  %v422 = vpop.f32.mrb[0].mxu0
  %v423 = vpop.f32.mrb[0].mxu0
  %v424 = vadd.f32 %v289, %v423
  %v425 = vpop.f32.mrb[0].mxu0
  %426 = vmatprep.mubr.bf16.mxu0 0
  %427 = vmatmul.mubr.bf16.gmra.mrb[0].mxu0 %v329
  %v428 = vpop.f32.mrb[0].mxu0
  %v429 = vadd.f32 %v289, %v428
  %v430 = vpop.f32.mrb[0].mxu0
  %v431 = vpop.f32.mrb[0].mxu0
  %v432 = vadd.f32 %v289, %v431
  %v433 = vpop.f32.mrb[0].mxu0
  %434 = vdwg.mxu0
  %v435 = vmax.f32 %v373, 0.0
  %v436 = vmax.f32 %v376, 0.0
  %v437 = vmax.f32 %v381, 0.0
  %v438 = vmax.f32 %v384, 0.0
  %v439 = vmax.f32 %v389, 0.0
  %v440 = vmax.f32 %v392, 0.0
  %v441 = vmax.f32 %v397, 0.0
  %v442 = vmax.f32 %v400, 0.0
  %v443 = vmax.f32 %v405, 0.0
  %v444 = vmax.f32 %v408, 0.0
  %v445 = vmax.f32 %v413, 0.0
  %v446 = vmax.f32 %v416, 0.0
  %v447 = vmax.f32 %v421, 0.0
  %v448 = vmax.f32 %v424, 0.0
  %v449 = vmax.f32 %v429, 0.0
  %v450 = vmax.f32 %v432, 0.0
  %v451 = vpack.c.bf16 %v436, %v435
  %v452 = vpack.c.bf16 %v438, %v437
  %v453 = vpack.c.bf16 %v440, %v439
  %v454 = vpack.c.bf16 %v442, %v441
  %v455 = vpack.c.bf16 %v444, %v443
  %v456 = vpack.c.bf16 %v446, %v445
  %v457 = vpack.c.bf16 %v448, %v447
  %v458 = vpack.c.bf16 %v450, %v449
  %v459 = vld [vmem:[%s3] sm:$0xf]
  %v460 = vld [vmem:[%s3 + $0x4] sm:$0xf]
  %v461 = vld [vmem:[%s3 + $0x8] sm:$0xf]
  %v462 = vld [vmem:[%s3 + $0xc] sm:$0xf]
  %v463 = vld [vmem:[%s3 + $0x10] sm:$0xf]
  %v464 = vld [vmem:[%s3 + $0x14] sm:$0xf]
  %v465 = vld [vmem:[%s3 + $0x18] sm:$0xf]
  %v466 = vld [vmem:[%s3 + $0x1c] sm:$0xf]
  %v467 = vld [vmem:[%s3 + $0x20] sm:$0xf]
  %v468 = vld [vmem:[%s3 + $0x24] sm:$0xf]
  %v469 = vld [vmem:[%s3 + $0x28] sm:$0xf]
  %v470 = vld [vmem:[%s3 + $0x2c] sm:$0xf]
  %v471 = vld [vmem:[%s3 + $0x30] sm:$0xf]
  %v472 = vld [vmem:[%s3 + $0x34] sm:$0xf]
  %v473 = vld [vmem:[%s3 + $0x38] sm:$0xf]
  %v474 = vld [vmem:[%s3 + $0x3c] sm:$0xf]
  %v491 = vunpack.c.l.b16 %v459
  %v492 = vunpack.c.l.b16 %v460
  %v493 = vunpack.c.l.b16 %v461
  %v494 = vunpack.c.l.b16 %v462
  %v495 = vunpack.c.l.b16 %v463
  %v496 = vunpack.c.l.b16 %v464
  %v497 = vunpack.c.l.b16 %v465
  %v498 = vunpack.c.l.b16 %v466
  %v499 = vunpack.c.l.b16 %v467
  %v500 = vunpack.c.l.b16 %v468
  %v501 = vunpack.c.l.b16 %v469
  %v502 = vunpack.c.l.b16 %v470
  %v503 = vunpack.c.l.b16 %v471
  %v504 = vunpack.c.l.b16 %v472
  %v505 = vunpack.c.l.b16 %v473
  %v506 = vunpack.c.l.b16 %v474
  %v507 = vpack.c.b16 %v492, %v491
  %v508 = vpack.c.b16 %v494, %v493
  %v509 = vpack.c.b16 %v496, %v495
  %v510 = vpack.c.b16 %v498, %v497
  %v511 = vpack.c.b16 %v500, %v499
  %v512 = vpack.c.b16 %v502, %v501
  %v513 = vpack.c.b16 %v504, %v503
  %v514 = vpack.c.b16 %v506, %v505
  %523 = vmatprep.subr.bf16.mxu0 0
  %524 = vmatpush1.bf16.msra.mxu0 %v507
  %525 = vmatprep.subr.bf16.mxu0 0
  %526 = vmatpush1.bf16.msra.mxu0 %v508
  %527 = vmatprep.subr.bf16.mxu0 0
  %528 = vmatpush1.bf16.msra.mxu0 %v509
  %529 = vmatprep.subr.bf16.mxu0 0
  %530 = vmatpush1.bf16.msra.mxu0 %v510
  %531 = vmatprep.subr.bf16.mxu0 0
  %532 = vmatpush1.bf16.msra.mxu0 %v511
  %533 = vmatprep.subr.bf16.mxu0 0
  %534 = vmatpush1.bf16.msra.mxu0 %v512
  %535 = vmatprep.subr.bf16.mxu0 0
  %536 = vmatpush1.bf16.msra.mxu0 %v513
  %537 = vmatprep.subr.bf16.mxu0 0
  %538 = vmatpush1.bf16.msra.mxu0 %v514
  %539 = vmatprep.subr.bf16.mxu0 0
  %540 = vmatpush1.bf16.msra.mxu0 0
  %541 = vmatprep.subr.bf16.mxu0 0
  %542 = vmatpush1.bf16.msra.mxu0 0
  %543 = vmatprep.subr.bf16.mxu0 0
  %544 = vmatpush1.bf16.msra.mxu0 0
  %545 = vmatprep.subr.bf16.mxu0 0
  %546 = vmatpush1.bf16.msra.mxu0 0
  %547 = vmatprep.subr.bf16.mxu0 0
  %548 = vmatpush1.bf16.msra.mxu0 0
  %549 = vmatprep.subr.bf16.mxu0 0
  %550 = vmatpush1.bf16.msra.mxu0 0
  %551 = vmatprep.subr.bf16.mxu0 0
  %552 = vmatpush1.bf16.msra.mxu0 0
  %553 = vmatprep.subr.bf16.mxu0 0
  %554 = vmatpush1.bf16.msra.mxu0 0
  %555 = vmatprep.mubr.bf16.mxu0 0
  %556 = vmatmul.mubr.bf16.gmra.mrb[0].mxu0 %v451
  %v557 = vpop.f32.mrb[0].mxu0
  %v558 = vadd.f32 0.0, %v557
  %v559 = vpop.f32.mrb[0].mxu0
  %v560 = vpop.f32.mrb[0].mxu0
  %v561 = vadd.f32 0.0, %v560
  %v562 = vpop.f32.mrb[0].mxu0
  %563 = vmatprep.mubr.bf16.mxu0 0
  %564 = vmatmul.mubr.bf16.gmra.mrb[0].mxu0 %v452
  %v565 = vpop.f32.mrb[0].mxu0
  %v566 = vadd.f32 0.0, %v565
  %v567 = vpop.f32.mrb[0].mxu0
  %v568 = vpop.f32.mrb[0].mxu0
  %v569 = vadd.f32 0.0, %v568
  %v570 = vpop.f32.mrb[0].mxu0
  %571 = vmatprep.mubr.bf16.mxu0 0
  %572 = vmatmul.mubr.bf16.gmra.mrb[0].mxu0 %v453
  %v573 = vpop.f32.mrb[0].mxu0
  %v574 = vadd.f32 0.0, %v573
  %v575 = vpop.f32.mrb[0].mxu0
  %v576 = vpop.f32.mrb[0].mxu0
  %v577 = vadd.f32 0.0, %v576
  %v578 = vpop.f32.mrb[0].mxu0
  %579 = vmatprep.mubr.bf16.mxu0 0
  %580 = vmatmul.mubr.bf16.gmra.mrb[0].mxu0 %v454
  %v581 = vpop.f32.mrb[0].mxu0
  %v582 = vadd.f32 0.0, %v581
  %v583 = vpop.f32.mrb[0].mxu0
  %v584 = vpop.f32.mrb[0].mxu0
  %v585 = vadd.f32 0.0, %v584
  %v586 = vpop.f32.mrb[0].mxu0
  %587 = vmatprep.mubr.bf16.mxu0 0
  %588 = vmatmul.mubr.bf16.gmra.mrb[0].mxu0 %v455
  %v589 = vpop.f32.mrb[0].mxu0
  %v590 = vadd.f32 0.0, %v589
  %v591 = vpop.f32.mrb[0].mxu0
  %v592 = vpop.f32.mrb[0].mxu0
  %v593 = vadd.f32 0.0, %v592
  %v594 = vpop.f32.mrb[0].mxu0
  %595 = vmatprep.mubr.bf16.mxu0 0
  %596 = vmatmul.mubr.bf16.gmra.mrb[0].mxu0 %v456
  %v597 = vpop.f32.mrb[0].mxu0
  %v598 = vadd.f32 0.0, %v597
  %v599 = vpop.f32.mrb[0].mxu0
  %v600 = vpop.f32.mrb[0].mxu0
  %v601 = vadd.f32 0.0, %v600
  %v602 = vpop.f32.mrb[0].mxu0
  %603 = vmatprep.mubr.bf16.mxu0 0
  %604 = vmatmul.mubr.bf16.gmra.mrb[0].mxu0 %v457
  %v605 = vpop.f32.mrb[0].mxu0
  %v606 = vadd.f32 0.0, %v605
  %v607 = vpop.f32.mrb[0].mxu0
  %v608 = vpop.f32.mrb[0].mxu0
  %v609 = vadd.f32 0.0, %v608
  %v610 = vpop.f32.mrb[0].mxu0
  %611 = vmatprep.mubr.bf16.mxu0 0
  %612 = vmatmul.mubr.bf16.gmra.mrb[0].mxu0 %v458
  %v613 = vpop.f32.mrb[0].mxu0
  %v614 = vadd.f32 0.0, %v613
  %v615 = vpop.f32.mrb[0].mxu0
  %v616 = vpop.f32.mrb[0].mxu0
  %v617 = vadd.f32 0.0, %v616
  %v618 = vpop.f32.mrb[0].mxu0
  %619 = vdwg.mxu0
  %v620 = vpack.c.bf16 %v561, %v558
  %v621 = vpack.c.bf16 %v569, %v566
  %v622 = vpack.c.bf16 %v577, %v574
  %v623 = vpack.c.bf16 %v585, %v582
  %v624 = vpack.c.bf16 %v593, %v590
  %v625 = vpack.c.bf16 %v601, %v598
  %v626 = vpack.c.bf16 %v609, %v606
  %v627 = vpack.c.bf16 %v617, %v614
  %v628 = vlaneseq
  %v629 = vshrl.u32 %v628, 7
  %v630 = vsub.s32 0, %v629
  %v631 = vrot.slane %v34, %v630
  %632 = vmatprep.subr.bf16.mxu0 0
  %633 = vmatpush1.bf16.msra.mxu0 %v620
  %634 = vmatprep.subr.bf16.mxu0 0
  %635 = vmatpush1.bf16.msra.mxu0 %v621
  %636 = vmatprep.subr.bf16.mxu0 0
  %637 = vmatpush1.bf16.msra.mxu0 %v622
  %638 = vmatprep.subr.bf16.mxu0 0
  %639 = vmatpush1.bf16.msra.mxu0 %v623
  %640 = vmatprep.subr.bf16.mxu0 0
  %641 = vmatpush1.bf16.msra.mxu0 %v624
  %642 = vmatprep.subr.bf16.mxu0 0
  %643 = vmatpush1.bf16.msra.mxu0 %v625
  %644 = vmatprep.subr.bf16.mxu0 0
  %645 = vmatpush1.bf16.msra.mxu0 %v626
  %646 = vmatprep.subr.bf16.mxu0 0
  %647 = vmatpush1.bf16.msra.mxu0 %v627
  %648 = vmatprep.subr.bf16.mxu0 0
  %649 = vmatpush1.bf16.msra.mxu0 0
  %650 = vmatprep.subr.bf16.mxu0 0
  %651 = vmatpush1.bf16.msra.mxu0 0
  %652 = vmatprep.subr.bf16.mxu0 0
  %653 = vmatpush1.bf16.msra.mxu0 0
  %654 = vmatprep.subr.bf16.mxu0 0
  %655 = vmatpush1.bf16.msra.mxu0 0
  %656 = vmatprep.subr.bf16.mxu0 0
  %657 = vmatpush1.bf16.msra.mxu0 0
  %658 = vmatprep.subr.bf16.mxu0 0
  %659 = vmatpush1.bf16.msra.mxu0 0
  %660 = vmatprep.subr.bf16.mxu0 0
  %661 = vmatpush1.bf16.msra.mxu0 0
  %662 = vmatprep.subr.bf16.mxu0 0
  %663 = vmatpush1.bf16.msra.mxu0 0
  %664 = vmatprep.mubr.bf16.mxu0 0
  %665 = vmatmul.mubr.bf16.gmra.mrb[0].mxu0 %v322
  %v666 = vpop.f32.mrb[0].mxu0
  %v667 = vadd.f32 %v631, %v666
  %v668 = vpop.f32.mrb[0].mxu0
  %v669 = vpop.f32.mrb[0].mxu0
  %v670 = vadd.f32 %v631, %v669
  %v671 = vpop.f32.mrb[0].mxu0
  %672 = vmatprep.mubr.bf16.mxu0 0
  %673 = vmatmul.mubr.bf16.gmra.mrb[0].mxu0 %v323
  %v674 = vpop.f32.mrb[0].mxu0
  %v675 = vadd.f32 %v631, %v674
  %v676 = vpop.f32.mrb[0].mxu0
  %v677 = vpop.f32.mrb[0].mxu0
  %v678 = vadd.f32 %v631, %v677
  %v679 = vpop.f32.mrb[0].mxu0
  %680 = vmatprep.mubr.bf16.mxu0 0
  %681 = vmatmul.mubr.bf16.gmra.mrb[0].mxu0 %v324
  %v682 = vpop.f32.mrb[0].mxu0
  %v683 = vadd.f32 %v631, %v682
  %v684 = vpop.f32.mrb[0].mxu0
  %v685 = vpop.f32.mrb[0].mxu0
  %v686 = vadd.f32 %v631, %v685
  %v687 = vpop.f32.mrb[0].mxu0
  %688 = vmatprep.mubr.bf16.mxu0 0
  %689 = vmatmul.mubr.bf16.gmra.mrb[0].mxu0 %v325
  %v690 = vpop.f32.mrb[0].mxu0
  %v691 = vadd.f32 %v631, %v690
  %v692 = vpop.f32.mrb[0].mxu0
  %v693 = vpop.f32.mrb[0].mxu0
  %v694 = vadd.f32 %v631, %v693
  %v695 = vpop.f32.mrb[0].mxu0
  %696 = vmatprep.mubr.bf16.mxu0 0
  %697 = vmatmul.mubr.bf16.gmra.mrb[0].mxu0 %v326
  %v698 = vpop.f32.mrb[0].mxu0
  %v699 = vadd.f32 %v631, %v698
  %v700 = vpop.f32.mrb[0].mxu0
  %v701 = vpop.f32.mrb[0].mxu0
  %v702 = vadd.f32 %v631, %v701
  %v703 = vpop.f32.mrb[0].mxu0
  %704 = vmatprep.mubr.bf16.mxu0 0
  %705 = vmatmul.mubr.bf16.gmra.mrb[0].mxu0 %v327
  %v706 = vpop.f32.mrb[0].mxu0
  %v707 = vadd.f32 %v631, %v706
  %v708 = vpop.f32.mrb[0].mxu0
  %v709 = vpop.f32.mrb[0].mxu0
  %v710 = vadd.f32 %v631, %v709
  %v711 = vpop.f32.mrb[0].mxu0
  %712 = vmatprep.mubr.bf16.mxu0 0
  %713 = vmatmul.mubr.bf16.gmra.mrb[0].mxu0 %v328
  %v714 = vpop.f32.mrb[0].mxu0
  %v715 = vadd.f32 %v631, %v714
  %v716 = vpop.f32.mrb[0].mxu0
  %v717 = vpop.f32.mrb[0].mxu0
  %v718 = vadd.f32 %v631, %v717
  %v719 = vpop.f32.mrb[0].mxu0
  %720 = vmatprep.mubr.bf16.mxu0 0
  %721 = vmatmul.mubr.bf16.gmra.mrb[0].mxu0 %v329
  %v722 = vpop.f32.mrb[0].mxu0
  %v723 = vadd.f32 %v631, %v722
  %v724 = vpop.f32.mrb[0].mxu0
  %v725 = vpop.f32.mrb[0].mxu0
  %v726 = vadd.f32 %v631, %v725
  %v727 = vpop.f32.mrb[0].mxu0
  %728 = vdwg.mxu0
  %v729 = vld [vmem:[%s4] sm:$0xf]
  %v730 = vld [vmem:[%s4 + $0x4] sm:$0xf]
  %v731 = vld [vmem:[%s4 + $0x8] sm:$0xf]
  %v732 = vld [vmem:[%s4 + $0xc] sm:$0xf]
  %v733 = vpack.c.bf16 %v670, %v667
  %v734 = vpack.c.bf16 %v678, %v675
  %v735 = vpack.c.bf16 %v686, %v683
  %v736 = vpack.c.bf16 %v694, %v691
  %v737 = vpack.c.bf16 %v702, %v699
  %v738 = vpack.c.bf16 %v710, %v707
  %v739 = vpack.c.bf16 %v718, %v715
  %v740 = vpack.c.bf16 %v726, %v723
  %v745 = vunpack.c.l.b16 %v729
  %v746 = vunpack.c.l.b16 %v730
  %v747 = vunpack.c.l.b16 %v731
  %v748 = vunpack.c.l.b16 %v732
  %v749 = vpack.c.b16 %v746, %v745
  %v750 = vpack.c.b16 %v748, %v747
  %753 = vmatprep.subr.bf16.mxu0 0
  %754 = vmatpush1.bf16.msra.mxu0 %v733
  %755 = vmatprep.subr.bf16.mxu0 0
  %756 = vmatpush1.bf16.msra.mxu0 %v734
  %757 = vmatprep.subr.bf16.mxu0 0
  %758 = vmatpush1.bf16.msra.mxu0 %v735
  %759 = vmatprep.subr.bf16.mxu0 0
  %760 = vmatpush1.bf16.msra.mxu0 %v736
  %761 = vmatprep.subr.bf16.mxu0 0
  %762 = vmatpush1.bf16.msra.mxu0 %v737
  %763 = vmatprep.subr.bf16.mxu0 0
  %764 = vmatpush1.bf16.msra.mxu0 %v738
  %765 = vmatprep.subr.bf16.mxu0 0
  %766 = vmatpush1.bf16.msra.mxu0 %v739
  %767 = vmatprep.subr.bf16.mxu0 0
  %768 = vmatpush1.bf16.msra.mxu0 %v740
  %769 = vmatprep.subr.bf16.mxu0 0
  %770 = vmatpush1.bf16.msra.mxu0 0
  %771 = vmatprep.subr.bf16.mxu0 0
  %772 = vmatpush1.bf16.msra.mxu0 0
  %773 = vmatprep.subr.bf16.mxu0 0
  %774 = vmatpush1.bf16.msra.mxu0 0
  %775 = vmatprep.subr.bf16.mxu0 0
  %776 = vmatpush1.bf16.msra.mxu0 0
  %777 = vmatprep.subr.bf16.mxu0 0
  %778 = vmatpush1.bf16.msra.mxu0 0
  %779 = vmatprep.subr.bf16.mxu0 0
  %780 = vmatpush1.bf16.msra.mxu0 0
  %781 = vmatprep.subr.bf16.mxu0 0
  %782 = vmatpush1.bf16.msra.mxu0 0
  %783 = vmatprep.subr.bf16.mxu0 0
  %784 = vmatpush1.bf16.msra.mxu0 0
  %785 = vmatprep.mubr.bf16.mxu0 0
  %786 = vmatmul.mubr.bf16.gmra.mrb[0].mxu0 %v749
  %v787 = vpop.f32.mrb[0].mxu0
  %v788 = vadd.f32 0.0, %v787
  %v789 = vpop.f32.mrb[0].mxu0
  %v790 = vpop.f32.mrb[0].mxu0
  %v791 = vadd.f32 0.0, %v790
  %v792 = vpop.f32.mrb[0].mxu0
  %793 = vmatprep.mubr.bf16.mxu0 0
  %794 = vmatmul.mubr.bf16.gmra.mrb[0].mxu0 %v750
  %v795 = vpop.f32.mrb[0].mxu0
  %v796 = vadd.f32 0.0, %v795
  %v797 = vpop.f32.mrb[0].mxu0
  %v798 = vpop.f32.mrb[0].mxu0
  %v799 = vadd.f32 0.0, %v798
  %v800 = vpop.f32.mrb[0].mxu0
  %801 = vdwg.mxu0
  %v802 = vpack.c.bf16 %v791, %v788
  %v803 = vpack.c.bf16 %v799, %v796
  %v804 = vld [vmem:[%s5] sm:$0xf]
  %v805 = vld [vmem:[%s5 + $0x4] sm:$0xf]
  %v806 = vld [vmem:[%s5 + $0x8] sm:$0xf]
  %v807 = vld [vmem:[%s5 + $0xc] sm:$0xf]
  %v808 = vld [vmem:[%s5 + $0x10] sm:$0xf]
  %v809 = vld [vmem:[%s5 + $0x14] sm:$0xf]
  %v810 = vld [vmem:[%s5 + $0x18] sm:$0xf]
  %v811 = vld [vmem:[%s5 + $0x1c] sm:$0xf]
  %v812 = vld [vmem:[%s5 + $0x20] sm:$0xf]
  %v813 = vld [vmem:[%s5 + $0x24] sm:$0xf]
  %v814 = vld [vmem:[%s5 + $0x28] sm:$0xf]
  %v815 = vld [vmem:[%s5 + $0x2c] sm:$0xf]
  %v816 = vld [vmem:[%s5 + $0x30] sm:$0xf]
  %v817 = vld [vmem:[%s5 + $0x34] sm:$0xf]
  %v818 = vld [vmem:[%s5 + $0x38] sm:$0xf]
  %v819 = vld [vmem:[%s5 + $0x3c] sm:$0xf]
  %v820 = vld [vmem:[%s6] sm:$0xf]
  %v821 = vld [vmem:[%s6 + $0x4] sm:$0xf]
  %v822 = vld [vmem:[%s6 + $0x8] sm:$0xf]
  %v823 = vld [vmem:[%s6 + $0xc] sm:$0xf]
  %v824 = vld [vmem:[%s6 + $0x10] sm:$0xf]
  %v825 = vld [vmem:[%s6 + $0x14] sm:$0xf]
  %v826 = vld [vmem:[%s6 + $0x18] sm:$0xf]
  %v827 = vld [vmem:[%s6 + $0x1c] sm:$0xf]
  %v828 = vld [vmem:[%s6 + $0x20] sm:$0xf]
  %v829 = vld [vmem:[%s6 + $0x24] sm:$0xf]
  %v830 = vld [vmem:[%s6 + $0x28] sm:$0xf]
  %v831 = vld [vmem:[%s6 + $0x2c] sm:$0xf]
  %v832 = vld [vmem:[%s6 + $0x30] sm:$0xf]
  %v833 = vld [vmem:[%s6 + $0x34] sm:$0xf]
  %v834 = vld [vmem:[%s6 + $0x38] sm:$0xf]
  %v835 = vld [vmem:[%s6 + $0x3c] sm:$0xf]
  %v852 = vunpack.c.l.b16 %v820
  %v853 = vunpack.c.l.b16 %v821
  %v854 = vunpack.c.l.b16 %v822
  %v855 = vunpack.c.l.b16 %v823
  %v856 = vunpack.c.l.b16 %v824
  %v857 = vunpack.c.l.b16 %v825
  %v858 = vunpack.c.l.b16 %v826
  %v859 = vunpack.c.l.b16 %v827
  %v860 = vunpack.c.l.b16 %v828
  %v861 = vunpack.c.l.b16 %v829
  %v862 = vunpack.c.l.b16 %v830
  %v863 = vunpack.c.l.b16 %v831
  %v864 = vunpack.c.l.b16 %v832
  %v865 = vunpack.c.l.b16 %v833
  %v866 = vunpack.c.l.b16 %v834
  %v867 = vunpack.c.l.b16 %v835
  %v868 = vpack.c.b16 %v853, %v852
  %v869 = vpack.c.b16 %v855, %v854
  %v870 = vpack.c.b16 %v857, %v856
  %v871 = vpack.c.b16 %v859, %v858
  %v872 = vpack.c.b16 %v861, %v860
  %v873 = vpack.c.b16 %v863, %v862
  %v874 = vpack.c.b16 %v865, %v864
  %v875 = vpack.c.b16 %v867, %v866
  %884 = vmatprep.subr.bf16.mxu0 0
  %885 = vmatpush1.bf16.msra.mxu0 %v868
  %886 = vmatprep.subr.bf16.mxu0 0
  %887 = vmatpush1.bf16.msra.mxu0 %v869
  %888 = vmatprep.subr.bf16.mxu0 0
  %889 = vmatpush1.bf16.msra.mxu0 %v870
  %890 = vmatprep.subr.bf16.mxu0 0
  %891 = vmatpush1.bf16.msra.mxu0 %v871
  %892 = vmatprep.subr.bf16.mxu0 0
  %893 = vmatpush1.bf16.msra.mxu0 %v872
  %894 = vmatprep.subr.bf16.mxu0 0
  %895 = vmatpush1.bf16.msra.mxu0 %v873
  %896 = vmatprep.subr.bf16.mxu0 0
  %897 = vmatpush1.bf16.msra.mxu0 %v874
  %898 = vmatprep.subr.bf16.mxu0 0
  %899 = vmatpush1.bf16.msra.mxu0 %v875
  %900 = vmatprep.subr.bf16.mxu0 0
  %901 = vmatpush1.bf16.msra.mxu0 0
  %902 = vmatprep.subr.bf16.mxu0 0
  %903 = vmatpush1.bf16.msra.mxu0 0
  %904 = vmatprep.subr.bf16.mxu0 0
  %905 = vmatpush1.bf16.msra.mxu0 0
  %906 = vmatprep.subr.bf16.mxu0 0
  %907 = vmatpush1.bf16.msra.mxu0 0
  %908 = vmatprep.subr.bf16.mxu0 0
  %909 = vmatpush1.bf16.msra.mxu0 0
  %910 = vmatprep.subr.bf16.mxu0 0
  %911 = vmatpush1.bf16.msra.mxu0 0
  %912 = vmatprep.subr.bf16.mxu0 0
  %913 = vmatpush1.bf16.msra.mxu0 0
  %914 = vmatprep.subr.bf16.mxu0 0
  %915 = vmatpush1.bf16.msra.mxu0 0
  %916 = vmatprep.mubr.bf16.mxu0 0
  %917 = vmatmul.mubr.bf16.gmra.mrb[0].mxu0 %v803
  %v918 = vpop.f32.mrb[0].mxu0
  %v919 = vadd.f32 0.0, %v918
  %v920 = vpop.f32.mrb[0].mxu0
  %v921 = vpop.f32.mrb[0].mxu0
  %v922 = vadd.f32 0.0, %v921
  %v923 = vpop.f32.mrb[0].mxu0
  %924 = vdwg.mxu0
  %v941 = vunpack.c.l.b16 %v804
  %v942 = vunpack.c.l.b16 %v805
  %v943 = vunpack.c.l.b16 %v806
  %v944 = vunpack.c.l.b16 %v807
  %v945 = vunpack.c.l.b16 %v808
  %v946 = vunpack.c.l.b16 %v809
  %v947 = vunpack.c.l.b16 %v810
  %v948 = vunpack.c.l.b16 %v811
  %v949 = vunpack.c.l.b16 %v812
  %v950 = vunpack.c.l.b16 %v813
  %v951 = vunpack.c.l.b16 %v814
  %v952 = vunpack.c.l.b16 %v815
  %v953 = vunpack.c.l.b16 %v816
  %v954 = vunpack.c.l.b16 %v817
  %v955 = vunpack.c.l.b16 %v818
  %v956 = vunpack.c.l.b16 %v819
  %v957 = vpack.c.b16 %v942, %v941
  %v958 = vpack.c.b16 %v944, %v943
  %v959 = vpack.c.b16 %v946, %v945
  %v960 = vpack.c.b16 %v948, %v947
  %v961 = vpack.c.b16 %v950, %v949
  %v962 = vpack.c.b16 %v952, %v951
  %v963 = vpack.c.b16 %v954, %v953
  %v964 = vpack.c.b16 %v956, %v955
  %973 = vmatprep.subr.bf16.mxu0 0
  %974 = vmatpush1.bf16.msra.mxu0 %v957
  %975 = vmatprep.subr.bf16.mxu0 0
  %976 = vmatpush1.bf16.msra.mxu0 %v958
  %977 = vmatprep.subr.bf16.mxu0 0
  %978 = vmatpush1.bf16.msra.mxu0 %v959
  %979 = vmatprep.subr.bf16.mxu0 0
  %980 = vmatpush1.bf16.msra.mxu0 %v960
  %981 = vmatprep.subr.bf16.mxu0 0
  %982 = vmatpush1.bf16.msra.mxu0 %v961
  %983 = vmatprep.subr.bf16.mxu0 0
  %984 = vmatpush1.bf16.msra.mxu0 %v962
  %985 = vmatprep.subr.bf16.mxu0 0
  %986 = vmatpush1.bf16.msra.mxu0 %v963
  %987 = vmatprep.subr.bf16.mxu0 0
  %988 = vmatpush1.bf16.msra.mxu0 %v964
  %989 = vmatprep.subr.bf16.mxu0 0
  %990 = vmatpush1.bf16.msra.mxu0 0
  %991 = vmatprep.subr.bf16.mxu0 0
  %992 = vmatpush1.bf16.msra.mxu0 0
  %993 = vmatprep.subr.bf16.mxu0 0
  %994 = vmatpush1.bf16.msra.mxu0 0
  %995 = vmatprep.subr.bf16.mxu0 0
  %996 = vmatpush1.bf16.msra.mxu0 0
  %997 = vmatprep.subr.bf16.mxu0 0
  %998 = vmatpush1.bf16.msra.mxu0 0
  %999 = vmatprep.subr.bf16.mxu0 0
  %1000 = vmatpush1.bf16.msra.mxu0 0
  %1001 = vmatprep.subr.bf16.mxu0 0
  %1002 = vmatpush1.bf16.msra.mxu0 0
  %1003 = vmatprep.subr.bf16.mxu0 0
  %1004 = vmatpush1.bf16.msra.mxu0 0
  %1005 = vmatprep.mubr.bf16.mxu0 0
  %1006 = vmatmul.mubr.bf16.gmra.mrb[0].mxu0 %v802
  %v1007 = vpop.f32.mrb[0].mxu0
  %v1008 = vadd.f32 %v919, %v1007
  %v1009 = vpop.f32.mrb[0].mxu0
  %v1010 = vpop.f32.mrb[0].mxu0
  %v1011 = vadd.f32 %v922, %v1010
  %v1012 = vpop.f32.mrb[0].mxu0
  %1013 = vdwg.mxu0
  %v1014 = vlaneseq
  %v1015 = vshrl.u32 %v1014, 7
  %v1016 = vsub.s32 0, %v1015
  %v1017 = vrot.slane %v35, %v1016
  %v1018 = vadd.f32 %v1008, %v1017
  %v1019 = vadd.f32 %v1011, %v1017
  %v1020 = vmax.f32 %v1018, 0.0
  %v1021 = vmax.f32 %v1019, 0.0
  %v1022 = vpack.c.bf16 %v1021, %v1020
  %v1023 = vld [vmem:[%s7] sm:$0xf]
  %v1024 = vld [vmem:[%s7 + $0x4] sm:$0xf]
  %v1025 = vld [vmem:[%s7 + $0x8] sm:$0xf]
  %v1026 = vld [vmem:[%s7 + $0xc] sm:$0xf]
  %v1027 = vld [vmem:[%s7 + $0x10] sm:$0xf]
  %v1028 = vld [vmem:[%s7 + $0x14] sm:$0xf]
  %v1029 = vld [vmem:[%s7 + $0x18] sm:$0xf]
  %v1030 = vld [vmem:[%s7 + $0x1c] sm:$0xf]
  %v1031 = vld [vmem:[%s7 + $0x20] sm:$0xf]
  %v1032 = vld [vmem:[%s7 + $0x24] sm:$0xf]
  %v1033 = vld [vmem:[%s7 + $0x28] sm:$0xf]
  %v1034 = vld [vmem:[%s7 + $0x2c] sm:$0xf]
  %v1035 = vld [vmem:[%s7 + $0x30] sm:$0xf]
  %v1036 = vld [vmem:[%s7 + $0x34] sm:$0xf]
  %v1037 = vld [vmem:[%s7 + $0x38] sm:$0xf]
  %v1038 = vld [vmem:[%s7 + $0x3c] sm:$0xf]
  %v1039 = vlaneseq
  %v1040 = vshrl.u32 %v1039, 7
  %v1041 = vsub.s32 0, %v1040
  %v1042 = vrot.slane %v36, %v1041
  %v1059 = vunpack.c.l.b16 %v1023
  %v1060 = vunpack.c.l.b16 %v1024
  %v1061 = vunpack.c.l.b16 %v1025
  %v1062 = vunpack.c.l.b16 %v1026
  %v1063 = vunpack.c.l.b16 %v1027
  %v1064 = vunpack.c.l.b16 %v1028
  %v1065 = vunpack.c.l.b16 %v1029
  %v1066 = vunpack.c.l.b16 %v1030
  %v1067 = vunpack.c.l.b16 %v1031
  %v1068 = vunpack.c.l.b16 %v1032
  %v1069 = vunpack.c.l.b16 %v1033
  %v1070 = vunpack.c.l.b16 %v1034
  %v1071 = vunpack.c.l.b16 %v1035
  %v1072 = vunpack.c.l.b16 %v1036
  %v1073 = vunpack.c.l.b16 %v1037
  %v1074 = vunpack.c.l.b16 %v1038
  %v1075 = vpack.c.b16 %v1060, %v1059
  %v1076 = vpack.c.b16 %v1062, %v1061
  %v1077 = vpack.c.b16 %v1064, %v1063
  %v1078 = vpack.c.b16 %v1066, %v1065
  %v1079 = vpack.c.b16 %v1068, %v1067
  %v1080 = vpack.c.b16 %v1070, %v1069
  %v1081 = vpack.c.b16 %v1072, %v1071
  %v1082 = vpack.c.b16 %v1074, %v1073
  %1091 = vmatprep.subr.bf16.mxu0 0
  %1092 = vmatpush1.bf16.msra.mxu0 %v1075
  %1093 = vmatprep.subr.bf16.mxu0 0
  %1094 = vmatpush1.bf16.msra.mxu0 %v1076
  %1095 = vmatprep.subr.bf16.mxu0 0
  %1096 = vmatpush1.bf16.msra.mxu0 %v1077
  %1097 = vmatprep.subr.bf16.mxu0 0
  %1098 = vmatpush1.bf16.msra.mxu0 %v1078
  %1099 = vmatprep.subr.bf16.mxu0 0
  %1100 = vmatpush1.bf16.msra.mxu0 %v1079
  %1101 = vmatprep.subr.bf16.mxu0 0
  %1102 = vmatpush1.bf16.msra.mxu0 %v1080
  %1103 = vmatprep.subr.bf16.mxu0 0
  %1104 = vmatpush1.bf16.msra.mxu0 %v1081
  %1105 = vmatprep.subr.bf16.mxu0 0
  %1106 = vmatpush1.bf16.msra.mxu0 %v1082
  %1107 = vmatprep.subr.bf16.mxu0 0
  %1108 = vmatpush1.bf16.msra.mxu0 0
  %1109 = vmatprep.subr.bf16.mxu0 0
  %1110 = vmatpush1.bf16.msra.mxu0 0
  %1111 = vmatprep.subr.bf16.mxu0 0
  %1112 = vmatpush1.bf16.msra.mxu0 0
  %1113 = vmatprep.subr.bf16.mxu0 0
  %1114 = vmatpush1.bf16.msra.mxu0 0
  %1115 = vmatprep.subr.bf16.mxu0 0
  %1116 = vmatpush1.bf16.msra.mxu0 0
  %1117 = vmatprep.subr.bf16.mxu0 0
  %1118 = vmatpush1.bf16.msra.mxu0 0
  %1119 = vmatprep.subr.bf16.mxu0 0
  %1120 = vmatpush1.bf16.msra.mxu0 0
  %1121 = vmatprep.subr.bf16.mxu0 0
  %1122 = vmatpush1.bf16.msra.mxu0 0
  %1123 = vmatprep.mubr.bf16.mxu0 0
  %1124 = vmatmul.mubr.bf16.gmra.mrb[0].mxu0 %v1022
  %v1125 = vpop.f32.mrb[0].mxu0
  %v1126 = vadd.f32 %v1042, %v1125
  %v1127 = vpop.f32.mrb[0].mxu0
  %v1128 = vpop.f32.mrb[0].mxu0
  %v1129 = vadd.f32 %v1042, %v1128
  %v1130 = vpop.f32.mrb[0].mxu0
  %1131 = vdwg.mxu0
  %v1132 = vsub.f32 0.0, %v1126
  %v1133 = vsub.f32 0.0, %v1129
  %v1134 = vmul.f32 %v1132, 1.442695
  %v1135 = vpow.pop %v1134
  %v1136 = vmul.f32 %v1133, 1.442695
  %v1137 = vpow.pop %v1136
  %v1138 = vadd.f32 %v1135, 1.0
  %v1139 = vadd.f32 %v1137, 1.0
  %v1140 = vrcp.pop %v1138
  %v1141 = vrcp.pop %v1139
  %1142 = vst [vmem:[%s9] sm:$0xff] %v1140
  %1143 = vst [vmem:[%s9 + $0x8] sm:$0xff] %v1141
  // Predicated region
  $region38: #{forward.1} parent=0 // pred_check
    _
  $region39: #{forward.1} parent=0 // pred_check_branch
    %1145 = sbr.rel (0) target = $region41
  $region40: #{forward.1} parent=0 // pred_region
    _
  $region41: #{forward.1} parent=0 // pred_fallthru
    _
  // Predicated region
  $region42: #{forward.1} parent=0 // pred_check
    _
  $region43: #{forward.1} parent=0 // pred_check_branch
    %1147 = sbr.rel (0) target = $region45
  $region44: #{forward.1} parent=0 // pred_region
    _
  $region45: #{forward.1} parent=0 // pred_fallthru
    _

</llo_original>
